<compile_context>
chip_gen: v6e
topology: v6e:2x2x1
jax: 0.10.0
libtpu: 0.0.40
codegen_flags: <defaults>
</compile_context>

<pallas_src>
import functools

import jax
import jax.numpy as jnp
from jax.experimental import pallas as pl
from jax.experimental.pallas import tpu as pltpu

EPS = 1e-5  # nn.LayerNorm default


def _layernorm(h, gamma, beta):
    # Single-pass variance (E[h^2] - mu^2): one fewer cross-lane (XLU)
    # reduction and no extra (h - mu)^2 temporary per layer.  Activations are
    # LayerNorm/ReLU bounded so cancellation is benign; clamp at 0 for safety.
    mu = jnp.mean(h, axis=-1, keepdims=True)
    var = jnp.maximum(jnp.mean(h * h, axis=-1, keepdims=True) - mu * mu, 0.0)
    return (h - mu) * jax.lax.rsqrt(var + EPS) * gamma + beta


def layernormnet_kernel(x_ref, w1_ref, w2_ref, w3_ref, vecs_ref, b3_ref, o_ref):
    x = x_ref[...]

    # The six (1, hidden) vectors are packed into one (8, hidden) slab:
    # rows = [b1, g1, be1, b2, g2, be2, 0, 0]  -> one DMA/buffer instead of six.
    vecs = vecs_ref[...]
    b1, g1, be1 = vecs[0:1, :], vecs[1:2, :], vecs[2:3, :]
    b2, g2, be2 = vecs[3:4, :], vecs[4:5, :], vecs[5:6, :]

    # fc1 -> ln1 -> (dropout: identity) -> relu
    h = jnp.dot(x.astype(jnp.bfloat16), w1_ref[...],
                preferred_element_type=jnp.float32) + b1
    h = jnp.maximum(_layernorm(h, g1, be1), 0.0)

    # fc2 -> ln2 -> (dropout: identity) -> relu
    h = jnp.dot(h.astype(jnp.bfloat16), w2_ref[...],
                preferred_element_type=jnp.float32) + b2
    h = jnp.maximum(_layernorm(h, g2, be2), 0.0)

    # fc3
    o_ref[...] = (jnp.dot(h.astype(jnp.bfloat16), w3_ref[...],
                          preferred_element_type=jnp.float32)
                  + b3_ref[...]).astype(o_ref.dtype)


def _round_up(x, m):
    return ((x + m - 1) // m) * m


@functools.partial(jax.jit, static_argnames=("block_b",))
def layernormnet_forward(x, params, block_b=None):
    B, input_dim = x.shape
    hidden_dim = params["w1"].shape[1]
    out_dim = params["w3"].shape[1]

    # Batch tile as large as reasonable so the MXU M dimension is filled
    # (256-row tiles match the v6e/v7x 256x256 MXU; v5e's 128x128 is happy too).
    # Small B -> single tile, grid=(1,): no per-step pipeline overhead and the
    # weights are only fetched once.  Large B -> block_b=256 gives >=2 grid
    # steps so the "parallel" batch axis can shard across v7x's 2 TensorCores.
    if block_b is None:
        block_b = 256 if B >= 256 else _round_up(B, 8)
    num_tiles = pl.cdiv(B, block_b)
    b_pad = num_tiles * block_b
    x_p = jnp.pad(x, ((0, b_pad - B), (0, 0))) if b_pad != B else x

    # Pack the six (1, hidden) bias/gamma/beta vectors into one sublane-aligned
    # (8, hidden) slab.
    zrow = jnp.zeros((1, hidden_dim), jnp.float32)
    vecs = jnp.concatenate(
        [params["b1"], params["g1"], params["be1"],
         params["b2"], params["g2"], params["be2"], zrow, zrow], axis=0)

    # Weights / packed vectors have a constant index_map across the grid, so
    # don't double-buffer them when the grid actually iterates (halves their
    # VMEM footprint as hidden_dim scales).  With a single grid step they are
    # fetched once anyway.
    resident = (dict(pipeline_mode=pl.Buffered(buffer_count=1))
                if num_tiles > 1 else {})
    full = lambda shape: pl.BlockSpec(shape, lambda i: (0, 0), **resident)
    # TODO(synk): for very large hidden_dim on v7x (64 MiB VMEM), tile the
    # weights over K/N with an accumulator scratch instead of keeping them
    # fully resident.

    out = pl.pallas_call(
        layernormnet_kernel,
        out_shape=jax.ShapeDtypeStruct((b_pad, out_dim), x.dtype),
        grid_spec=pltpu.PrefetchScalarGridSpec(
            num_scalar_prefetch=0,
            grid=(num_tiles,),
            in_specs=[
                pl.BlockSpec((block_b, input_dim), lambda i: (i, 0)),  # x tile
                full((input_dim, hidden_dim)),    # w1 (bf16)
                full((hidden_dim, hidden_dim)),   # w2 (bf16)
                full((hidden_dim, out_dim)),      # w3 (bf16)
                full((8, hidden_dim)),            # packed b1,g1,be1,b2,g2,be2
                full((1, out_dim)),               # b3
            ],
            out_specs=pl.BlockSpec((block_b, out_dim), lambda i: (i, 0)),
        ),
        compiler_params=pltpu.CompilerParams(
            dimension_semantics=("parallel",),
            vmem_limit_bytes=48 * 1024 * 1024,
        ),
    )(x_p, params["w1"], params["w2"], params["w3"], vecs, params["b3"])

    return out[:B]


def init_params(key, input_dim, hidden_dim, out_dim):
    """Same shapes as the PyTorch module; Linear weights stored transposed
    (in_features, out_features) and cast to bf16 for the MXU; biases and
    LayerNorm affine params stay f32."""
    ks = jax.random.split(key, 6)

    def linear(kw, kb, fan_in, fan_out):
        bound = 1.0 / (fan_in ** 0.5)
        w = jax.random.uniform(kw, (fan_in, fan_out), jnp.float32, -bound, bound)
        b = jax.random.uniform(kb, (1, fan_out), jnp.float32, -bound, bound)
        return w.astype(jnp.bfloat16), b

    w1, b1 = linear(ks[0], ks[1], input_dim, hidden_dim)
    w2, b2 = linear(ks[2], ks[3], hidden_dim, hidden_dim)
    w3, b3 = linear(ks[4], ks[5], hidden_dim, out_dim)
    return {
        "w1": w1, "b1": b1,
        "g1": jnp.ones((1, hidden_dim), jnp.float32),
        "be1": jnp.zeros((1, hidden_dim), jnp.float32),
        "w2": w2, "b2": b2,
        "g2": jnp.ones((1, hidden_dim), jnp.float32),
        "be2": jnp.zeros((1, hidden_dim), jnp.float32),
        "w3": w3, "b3": b3,
    }


def reference_forward(x, p):
    """Pure-JAX reference with the same bf16-weight / f32-accumulate matmuls
    and canonical (two-pass) LayerNorm."""
    def ln(h, g, b):
        mu = jnp.mean(h, axis=-1, keepdims=True)
        var = jnp.mean((h - mu) ** 2, axis=-1, keepdims=True)
        return (h - mu) * jax.lax.rsqrt(var + EPS) * g + b

    def dot(a, w):
        return jnp.dot(a.astype(jnp.bfloat16), w,
                       preferred_element_type=jnp.float32)

    h = jnp.maximum(ln(dot(x, p["w1"]) + p["b1"], p["g1"], p["be1"]), 0.0)
    h = jnp.maximum(ln(dot(h, p["w2"]) + p["b2"], p["g2"], p["be2"]), 0.0)
    return dot(h, p["w3"]) + p["b3"]


if __name__ == "__main__":
    B, INPUT_DIM, HIDDEN_DIM, OUT_DIM = 16, 256, 256, 128

    key = jax.random.PRNGKey(0)
    kx, kp = jax.random.split(key)
    x = jax.random.normal(kx, (B, INPUT_DIM), jnp.float32)
    params = init_params(kp, INPUT_DIM, HIDDEN_DIM, OUT_DIM)

    out = layernormnet_forward(x, params)
    jax.block_until_ready(out)

    ref = reference_forward(x, params)
    assert out.shape == (B, OUT_DIM)
    assert jnp.allclose(out, ref, atol=2e-3, rtol=2e-3), "mismatch vs reference"

    print("KERNEL_OK")
</pallas_src>

<mosaic_0001>
module attributes {stable_mosaic.version = 11 : i64} {
  func.func @layernormnet_kernel(%arg0: i32, %arg1: memref<16x256xf32, #tpu.memory_space<vmem>>, %arg2: memref<256x256xbf16, #tpu.memory_space<vmem>>, %arg3: memref<256x256xbf16, #tpu.memory_space<vmem>>, %arg4: memref<256x128xbf16, #tpu.memory_space<vmem>>, %arg5: memref<8x256xf32, #tpu.memory_space<vmem>>, %arg6: memref<1x128xf32, #tpu.memory_space<vmem>>, %arg7: memref<16x128xf32, #tpu.memory_space<vmem>>) attributes {dimension_semantics = [#tpu.dimension_semantics<parallel>], iteration_bounds = array<i64: 1>, scalar_prefetch = 0 : i64, scratch_operands = 0 : i64, tpu.core_type = #tpu.core_type<tc>, window_params = [{transform_indices = @transform_0, window_bounds = array<i64: 16, 256>}, {pipeline_mode = #tpu.pipeline_mode<synchronous>, transform_indices = @transform_1, window_bounds = array<i64: 256, 256>}, {pipeline_mode = #tpu.pipeline_mode<synchronous>, transform_indices = @transform_2, window_bounds = array<i64: 256, 256>}, {pipeline_mode = #tpu.pipeline_mode<synchronous>, transform_indices = @transform_3, window_bounds = array<i64: 256, 128>}, {pipeline_mode = #tpu.pipeline_mode<synchronous>, transform_indices = @transform_4, window_bounds = array<i64: 8, 256>}, {pipeline_mode = #tpu.pipeline_mode<synchronous>, transform_indices = @transform_5, window_bounds = array<i64: 1, 128>}, {transform_indices = @transform_6, window_bounds = array<i64: 16, 128>}]} {
    %c0 = arith.constant 0 : index
    %c0_0 = arith.constant 0 : index
    %0 = vector.load %arg1[%c0, %c0_0] : memref<16x256xf32, #tpu.memory_space<vmem>>, vector<16x256xf32>
    %c0_1 = arith.constant 0 : index
    %c0_2 = arith.constant 0 : index
    %1 = vector.load %arg5[%c0_1, %c0_2] : memref<8x256xf32, #tpu.memory_space<vmem>>, vector<8x256xf32>
    %2 = vector.extract_strided_slice %1 {offsets = [0, 0], sizes = [1, 256], strides = [1, 1]} : vector<8x256xf32> to vector<1x256xf32>
    %3 = vector.extract_strided_slice %1 {offsets = [1, 0], sizes = [1, 256], strides = [1, 1]} : vector<8x256xf32> to vector<1x256xf32>
    %4 = vector.extract_strided_slice %1 {offsets = [2, 0], sizes = [1, 256], strides = [1, 1]} : vector<8x256xf32> to vector<1x256xf32>
    %5 = vector.extract_strided_slice %1 {offsets = [3, 0], sizes = [1, 256], strides = [1, 1]} : vector<8x256xf32> to vector<1x256xf32>
    %6 = vector.extract_strided_slice %1 {offsets = [4, 0], sizes = [1, 256], strides = [1, 1]} : vector<8x256xf32> to vector<1x256xf32>
    %7 = vector.extract_strided_slice %1 {offsets = [5, 0], sizes = [1, 256], strides = [1, 1]} : vector<8x256xf32> to vector<1x256xf32>
    %8 = arith.truncf %0 : vector<16x256xf32> to vector<16x256xbf16>
    %c0_3 = arith.constant 0 : index
    %c0_4 = arith.constant 0 : index
    %9 = vector.load %arg2[%c0_3, %c0_4] : memref<256x256xbf16, #tpu.memory_space<vmem>>, vector<256x256xbf16>
    %cst = arith.constant dense<0.000000e+00> : vector<16x256xf32>
    %10 = tpu.matmul %8, %9, %cst {dimension_numbers = #tpu.dot_dimension_numbers<[1], [0], [0], [1], [0, 0, 1, 1], [], []>} : vector<16x256xbf16>, vector<256x256xbf16>, vector<16x256xf32> -> vector<16x256xf32>
    %11 = vector.broadcast %2 : vector<1x256xf32> to vector<16x256xf32>
    %12 = arith.addf %10, %11 : vector<16x256xf32>
    %cst_5 = arith.constant dense<0.000000e+00> : vector<16xf32>
    %13 = vector.multi_reduction <add>, %12, %cst_5 [1] : vector<16x256xf32> to vector<16xf32>
    %14 = vector.shape_cast %13 : vector<16xf32> to vector<16x1xf32>
    %cst_6 = arith.constant 2.560000e+02 : f32
    %15 = vector.broadcast %cst_6 : f32 to vector<16x1xf32>
    %16 = arith.divf %14, %15 : vector<16x1xf32>
    %17 = arith.mulf %12, %12 : vector<16x256xf32>
    %cst_7 = arith.constant dense<0.000000e+00> : vector<16xf32>
    %18 = vector.multi_reduction <add>, %17, %cst_7 [1] : vector<16x256xf32> to vector<16xf32>
    %19 = vector.shape_cast %18 : vector<16xf32> to vector<16x1xf32>
    %cst_8 = arith.constant 2.560000e+02 : f32
    %20 = vector.broadcast %cst_8 : f32 to vector<16x1xf32>
    %21 = arith.divf %19, %20 : vector<16x1xf32>
    %22 = arith.mulf %16, %16 : vector<16x1xf32>
    %23 = arith.subf %21, %22 : vector<16x1xf32>
    %cst_9 = arith.constant 0.000000e+00 : f32
    %24 = vector.broadcast %cst_9 : f32 to vector<16x1xf32>
    %25 = arith.maximumf %23, %24 : vector<16x1xf32>
    %26 = vector.broadcast %16 : vector<16x1xf32> to vector<16x256xf32>
    %27 = arith.subf %12, %26 : vector<16x256xf32>
    %cst_10 = arith.constant 9.99999974E-6 : f32
    %28 = vector.broadcast %cst_10 : f32 to vector<16x1xf32>
    %29 = arith.addf %25, %28 : vector<16x1xf32>
    %30 = math.rsqrt %29 : vector<16x1xf32>
    %31 = vector.broadcast %30 : vector<16x1xf32> to vector<16x256xf32>
    %32 = arith.mulf %27, %31 : vector<16x256xf32>
    %33 = vector.broadcast %3 : vector<1x256xf32> to vector<16x256xf32>
    %34 = arith.mulf %32, %33 : vector<16x256xf32>
    %35 = vector.broadcast %4 : vector<1x256xf32> to vector<16x256xf32>
    %36 = arith.addf %34, %35 : vector<16x256xf32>
    %cst_11 = arith.constant 0.000000e+00 : f32
    %37 = vector.broadcast %cst_11 : f32 to vector<16x256xf32>
    %38 = arith.maximumf %36, %37 : vector<16x256xf32>
    %39 = arith.truncf %38 : vector<16x256xf32> to vector<16x256xbf16>
    %c0_12 = arith.constant 0 : index
    %c0_13 = arith.constant 0 : index
    %40 = vector.load %arg3[%c0_12, %c0_13] : memref<256x256xbf16, #tpu.memory_space<vmem>>, vector<256x256xbf16>
    %cst_14 = arith.constant dense<0.000000e+00> : vector<16x256xf32>
    %41 = tpu.matmul %39, %40, %cst_14 {dimension_numbers = #tpu.dot_dimension_numbers<[1], [0], [0], [1], [0, 0, 1, 1], [], []>} : vector<16x256xbf16>, vector<256x256xbf16>, vector<16x256xf32> -> vector<16x256xf32>
    %42 = vector.broadcast %5 : vector<1x256xf32> to vector<16x256xf32>
    %43 = arith.addf %41, %42 : vector<16x256xf32>
    %cst_15 = arith.constant dense<0.000000e+00> : vector<16xf32>
    %44 = vector.multi_reduction <add>, %43, %cst_15 [1] : vector<16x256xf32> to vector<16xf32>
    %45 = vector.shape_cast %44 : vector<16xf32> to vector<16x1xf32>
    %cst_16 = arith.constant 2.560000e+02 : f32
    %46 = vector.broadcast %cst_16 : f32 to vector<16x1xf32>
    %47 = arith.divf %45, %46 : vector<16x1xf32>
    %48 = arith.mulf %43, %43 : vector<16x256xf32>
    %cst_17 = arith.constant dense<0.000000e+00> : vector<16xf32>
    %49 = vector.multi_reduction <add>, %48, %cst_17 [1] : vector<16x256xf32> to vector<16xf32>
    %50 = vector.shape_cast %49 : vector<16xf32> to vector<16x1xf32>
    %cst_18 = arith.constant 2.560000e+02 : f32
    %51 = vector.broadcast %cst_18 : f32 to vector<16x1xf32>
    %52 = arith.divf %50, %51 : vector<16x1xf32>
    %53 = arith.mulf %47, %47 : vector<16x1xf32>
    %54 = arith.subf %52, %53 : vector<16x1xf32>
    %cst_19 = arith.constant 0.000000e+00 : f32
    %55 = vector.broadcast %cst_19 : f32 to vector<16x1xf32>
    %56 = arith.maximumf %54, %55 : vector<16x1xf32>
    %57 = vector.broadcast %47 : vector<16x1xf32> to vector<16x256xf32>
    %58 = arith.subf %43, %57 : vector<16x256xf32>
    %cst_20 = arith.constant 9.99999974E-6 : f32
    %59 = vector.broadcast %cst_20 : f32 to vector<16x1xf32>
    %60 = arith.addf %56, %59 : vector<16x1xf32>
    %61 = math.rsqrt %60 : vector<16x1xf32>
    %62 = vector.broadcast %61 : vector<16x1xf32> to vector<16x256xf32>
    %63 = arith.mulf %58, %62 : vector<16x256xf32>
    %64 = vector.broadcast %6 : vector<1x256xf32> to vector<16x256xf32>
    %65 = arith.mulf %63, %64 : vector<16x256xf32>
    %66 = vector.broadcast %7 : vector<1x256xf32> to vector<16x256xf32>
    %67 = arith.addf %65, %66 : vector<16x256xf32>
    %cst_21 = arith.constant 0.000000e+00 : f32
    %68 = vector.broadcast %cst_21 : f32 to vector<16x256xf32>
    %69 = arith.maximumf %67, %68 : vector<16x256xf32>
    %70 = arith.truncf %69 : vector<16x256xf32> to vector<16x256xbf16>
    %c0_22 = arith.constant 0 : index
    %c0_23 = arith.constant 0 : index
    %71 = vector.load %arg4[%c0_22, %c0_23] : memref<256x128xbf16, #tpu.memory_space<vmem>>, vector<256x128xbf16>
    %cst_24 = arith.constant dense<0.000000e+00> : vector<16x128xf32>
    %72 = tpu.matmul %70, %71, %cst_24 {dimension_numbers = #tpu.dot_dimension_numbers<[1], [0], [0], [1], [0, 0, 1, 1], [], []>} : vector<16x256xbf16>, vector<256x128xbf16>, vector<16x128xf32> -> vector<16x128xf32>
    %c0_25 = arith.constant 0 : index
    %c0_26 = arith.constant 0 : index
    %73 = vector.load %arg6[%c0_25, %c0_26] : memref<1x128xf32, #tpu.memory_space<vmem>>, vector<1x128xf32>
    %74 = vector.broadcast %73 : vector<1x128xf32> to vector<16x128xf32>
    %75 = arith.addf %72, %74 : vector<16x128xf32>
    %c0_27 = arith.constant 0 : index
    %c0_28 = arith.constant 0 : index
    %76 = vector.load %arg7[%c0_27, %c0_28] : memref<16x128xf32, #tpu.memory_space<vmem>>, vector<16x128xf32>
    tpu.vector_store %arg7[%c0_27, %c0_28], %75 {strides = array<i32>} : memref<16x128xf32, #tpu.memory_space<vmem>>, vector<16x128xf32>,
    return
  }
  func.func @transform_0(%arg0: i32) -> (i32, i32) {
    %c0_i32 = arith.constant 0 : i32
    %c0_i32_0 = arith.constant 0 : i32
    return %arg0, %c0_i32 : i32, i32
  }
  func.func @transform_1(%arg0: i32) -> (i32, i32) {
    %c0_i32 = arith.constant 0 : i32
    %c0_i32_0 = arith.constant 0 : i32
    %c0_i32_1 = arith.constant 0 : i32
    return %c0_i32, %c0_i32_0 : i32, i32
  }
  func.func @transform_2(%arg0: i32) -> (i32, i32) {
    %c0_i32 = arith.constant 0 : i32
    %c0_i32_0 = arith.constant 0 : i32
    %c0_i32_1 = arith.constant 0 : i32
    return %c0_i32, %c0_i32_0 : i32, i32
  }
  func.func @transform_3(%arg0: i32) -> (i32, i32) {
    %c0_i32 = arith.constant 0 : i32
    %c0_i32_0 = arith.constant 0 : i32
    %c0_i32_1 = arith.constant 0 : i32
    return %c0_i32, %c0_i32_0 : i32, i32
  }
  func.func @transform_4(%arg0: i32) -> (i32, i32) {
    %c0_i32 = arith.constant 0 : i32
    %c0_i32_0 = arith.constant 0 : i32
    %c0_i32_1 = arith.constant 0 : i32
    return %c0_i32, %c0_i32_0 : i32, i32
  }
  func.func @transform_5(%arg0: i32) -> (i32, i32) {
    %c0_i32 = arith.constant 0 : i32
    %c0_i32_0 = arith.constant 0 : i32
    %c0_i32_1 = arith.constant 0 : i32
    return %c0_i32, %c0_i32_0 : i32, i32
  }
  func.func @transform_6(%arg0: i32) -> (i32, i32) {
    %c0_i32 = arith.constant 0 : i32
    %c0_i32_0 = arith.constant 0 : i32
    return %arg0, %c0_i32 : i32, i32
  }
}

</mosaic_0001>

<llo_original>
// kernel: layernormnet_forward.1
$region0: #{layernormnet_forward.1}
  #allocation0 [shape = 'u32[]', space=smem, size = 0x4, offset = 0x4, fixed_abs, tag = 'smem constant byte address 0x4 - core index']
  #allocation1 [shape = 'u32[144,128]{1,0:T(1,128)}', space=vmem, size = 0x12000, scoped, tag = 'internal scratch']
  %s0 = inlined_call_operand.vmem [shape: f32[16,256], index: 0, kind: input, shape index: {}]
  %s1 = inlined_call_operand.hbm [shape: bf16[256,256], index: 1, kind: input, shape index: {}]
  %s2 = inlined_call_operand.hbm [shape: bf16[256,256], index: 2, kind: input, shape index: {}]
  %s3 = inlined_call_operand.hbm [shape: bf16[256,128], index: 3, kind: input, shape index: {}]
  %s4 = inlined_call_operand.vmem [shape: f32[8,256], index: 4, kind: input, shape index: {}]
  %s5 = inlined_call_operand.hbm [shape: f32[1,128], index: 5, kind: input, shape index: {}]
  %s6 = inlined_call_operand.hbm [shape: f32[16,128], index: 6, kind: output, shape index: {}]
  %s7 = sld [smem:[#allocation0]]
  $region50: #{layernormnet_forward.1} parent=0
    _
  %s9 = ssub.s32 1, %s7
  %s10 = scalar_select 0, %s9, %s7
  $region1: #{layernormnet_forward.1} parent=0
    #allocation2 [shape = 'u8[131072]{0}', space=vmem, size = 0x20000, scoped, tag = 'input window, operand 1, single buffered']
    #allocation3 [shape = 's32[1]{0}', space=sflag, size = 0x4, scoped, tag = 'scoped memory for layernormnet_forward.1']
    #allocation4 [shape = 's32[1]{0}', space=sflag, size = 0x4, scoped, tag = 'scoped memory for layernormnet_forward.1']
    #allocation5 [shape = 'u8[131072]{0}', space=vmem, size = 0x20000, scoped, tag = 'input window, operand 2, single buffered']
    #allocation6 [shape = 's32[1]{0}', space=sflag, size = 0x4, scoped, tag = 'scoped memory for layernormnet_forward.1']
    #allocation7 [shape = 'u8[65536]{0}', space=vmem, size = 0x10000, scoped, tag = 'input window, operand 3, single buffered']
    #allocation8 [shape = 'u8[512]{0}', space=vmem, size = 0x400, scoped, tag = 'input window, operand 5, single buffered']
    #allocation9 [shape = 's32[1]{0}', space=sflag, size = 0x4, scoped, tag = 'scoped memory for layernormnet_forward.1']
    #allocation10 [shape = 'u8[8192]{0}', space=vmem, size = 0x2000, scoped, tag = 'output window, operand 0, single buffered']
    %11 = vsyncpa [#allocation3], 0
    %12 = vsyncpa [#allocation6], 0
    %13 = vsyncpa [#allocation9], 0
    %14 = vsyncpa [#allocation4], 0
    // Predicated region
    $region2: #{layernormnet_forward.1} parent=1 // pred_check
      _
    $region3: #{layernormnet_forward.1} parent=1 // pred_check_branch
      %16 = sbr.rel (0) target = $region5
    $region4: #{layernormnet_forward.1} parent=1 // pred_region
      _
    $region5: #{layernormnet_forward.1} parent=1 // pred_fallthru
      _
    // Predicated region
    $region6: #{layernormnet_forward.1} parent=1 // pred_check
      _
    $region7: #{layernormnet_forward.1} parent=1 // pred_check_branch
      %18 = sbr.rel (0) target = $region9
    $region8: #{layernormnet_forward.1} parent=1 // pred_region
      %s20 = ssub.s32 4096, 4096
      %21 = vsyncadd [#allocation3], %s20
      %s22 = sshll.u32 [#allocation2], 4
      %s23 = int_to_ptr.vmem [resolvable:$true] %s22
      %28 = dma.hbm_to_vmem [thread:$0]  %s1, 4096, %s23, [#allocation3], 128, 128, 8
    $region9: #{layernormnet_forward.1} parent=1 // pred_fallthru
      _
    // Predicated region
    $region10: #{layernormnet_forward.1} parent=1 // pred_check
      _
    $region11: #{layernormnet_forward.1} parent=1 // pred_check_branch
      %30 = sbr.rel (0) target = $region13
    $region12: #{layernormnet_forward.1} parent=1 // pred_region
      %s32 = ssub.s32 4096, 4096
      %33 = vsyncadd [#allocation6], %s32
      %s34 = sshll.u32 [#allocation5], 4
      %s35 = int_to_ptr.vmem [resolvable:$true] %s34
      %40 = dma.hbm_to_vmem [thread:$0]  %s2, 4096, %s35, [#allocation6], 128, 128, 8
    $region13: #{layernormnet_forward.1} parent=1 // pred_fallthru
      _
    // Predicated region
    $region14: #{layernormnet_forward.1} parent=1 // pred_check
      _
    $region15: #{layernormnet_forward.1} parent=1 // pred_check_branch
      %42 = sbr.rel (0) target = $region17
    $region16: #{layernormnet_forward.1} parent=1 // pred_region
      %s44 = ssub.s32 2048, 2048
      %45 = vsyncadd [#allocation6], %s44
      %s46 = sshll.u32 [#allocation7], 4
      %s47 = int_to_ptr.vmem [resolvable:$true] %s46
      %52 = dma.hbm_to_vmem [thread:$0]  %s3, 2048, %s47, [#allocation6], 64, 64, 4
    $region17: #{layernormnet_forward.1} parent=1 // pred_fallthru
      _
    // Predicated region
    $region18: #{layernormnet_forward.1} parent=1 // pred_check
      _
    $region19: #{layernormnet_forward.1} parent=1 // pred_check_branch
      %54 = sbr.rel (0) target = $region21
    $region20: #{layernormnet_forward.1} parent=1 // pred_region
      _
    $region21: #{layernormnet_forward.1} parent=1 // pred_fallthru
      _
    // Predicated region
    $region22: #{layernormnet_forward.1} parent=1 // pred_check
      _
    $region23: #{layernormnet_forward.1} parent=1 // pred_check_branch
      %56 = sbr.rel (0) target = $region25
    $region24: #{layernormnet_forward.1} parent=1 // pred_region
      %s58 = ssub.s32 16, 16
      %59 = vsyncadd [#allocation9], %s58
      %s61 = sshll.u32 [#allocation8], 4
      %s62 = int_to_ptr.vmem [resolvable:$true] %s61
      %64 = dma.hbm_to_vmem [thread:$0]  %s5, 16, %s62, [#allocation9]
    $region25: #{layernormnet_forward.1} parent=1 // pred_fallthru
      _
    // Predicated region
    $region26: #{layernormnet_forward.1} parent=1 // pred_check
      _
    $region27: #{layernormnet_forward.1} parent=1 // pred_check_branch
      %66 = sbr.rel (0) target = $region29
    $region28: #{layernormnet_forward.1} parent=1 // pred_region
      %67 = dma.done [#allocation3], 4096
    $region29: #{layernormnet_forward.1} parent=1 // pred_fallthru
      _
    // Predicated region
    $region30: #{layernormnet_forward.1} parent=1 // pred_check
      _
    $region31: #{layernormnet_forward.1} parent=1 // pred_check_branch
      %69 = sbr.rel (0) target = $region33
    $region32: #{layernormnet_forward.1} parent=1 // pred_region
      %70 = dma.done [#allocation6], 4096
    $region33: #{layernormnet_forward.1} parent=1 // pred_fallthru
      _
    // Predicated region
    $region34: #{layernormnet_forward.1} parent=1 // pred_check
      _
    $region35: #{layernormnet_forward.1} parent=1 // pred_check_branch
      %72 = sbr.rel (0) target = $region37
    $region36: #{layernormnet_forward.1} parent=1 // pred_region
      %73 = dma.done [#allocation6], 2048
    $region37: #{layernormnet_forward.1} parent=1 // pred_fallthru
      _
    // Predicated region
    $region38: #{layernormnet_forward.1} parent=1 // pred_check
      _
    $region39: #{layernormnet_forward.1} parent=1 // pred_check_branch
      %75 = sbr.rel (0) target = $region41
    $region40: #{layernormnet_forward.1} parent=1 // pred_region
      %76 = dma.done [#allocation9], 16
    $region41: #{layernormnet_forward.1} parent=1 // pred_fallthru
      _
    %v78 = vld [vmem:[%s0] sm:$0xff]
    %v79 = vld [vmem:[%s0 + $0x8] sm:$0xff]
    %v80 = vld [vmem:[%s0 + $0x10] sm:$0xff]
    %v81 = vld [vmem:[%s0 + $0x18] sm:$0xff]
    %v82 = vld [vmem:[%s4] sm:$0xff]
    %v83 = vld [vmem:[%s4 + $0x8] sm:$0xff]
    %v84 = vpack.c.bf16 %v80, %v78
    %v85 = vpack.c.bf16 %v81, %v79
    %v86 = vld [vmem:[#allocation2] sm:$0xff]
    %v87 = vld [vmem:[#allocation2 + $0x8] sm:$0xff]
    %v88 = vld [vmem:[#allocation2 + $0x10] sm:$0xff]
    %v89 = vld [vmem:[#allocation2 + $0x18] sm:$0xff]
    %v90 = vld [vmem:[#allocation2 + $0x20] sm:$0xff]
    %v91 = vld [vmem:[#allocation2 + $0x28] sm:$0xff]
    %v92 = vld [vmem:[#allocation2 + $0x30] sm:$0xff]
    %v93 = vld [vmem:[#allocation2 + $0x38] sm:$0xff]
    %v94 = vld [vmem:[#allocation2 + $0x40] sm:$0xff]
    %v95 = vld [vmem:[#allocation2 + $0x48] sm:$0xff]
    %v96 = vld [vmem:[#allocation2 + $0x50] sm:$0xff]
    %v97 = vld [vmem:[#allocation2 + $0x58] sm:$0xff]
    %v98 = vld [vmem:[#allocation2 + $0x60] sm:$0xff]
    %v99 = vld [vmem:[#allocation2 + $0x68] sm:$0xff]
    %v100 = vld [vmem:[#allocation2 + $0x70] sm:$0xff]
    %v101 = vld [vmem:[#allocation2 + $0x78] sm:$0xff]
    %v102 = vld [vmem:[#allocation2 + $0x80] sm:$0xff]
    %v103 = vld [vmem:[#allocation2 + $0x88] sm:$0xff]
    %v104 = vld [vmem:[#allocation2 + $0x90] sm:$0xff]
    %v105 = vld [vmem:[#allocation2 + $0x98] sm:$0xff]
    %v106 = vld [vmem:[#allocation2 + $0xa0] sm:$0xff]
    %v107 = vld [vmem:[#allocation2 + $0xa8] sm:$0xff]
    %v108 = vld [vmem:[#allocation2 + $0xb0] sm:$0xff]
    %v109 = vld [vmem:[#allocation2 + $0xb8] sm:$0xff]
    %v110 = vld [vmem:[#allocation2 + $0xc0] sm:$0xff]
    %v111 = vld [vmem:[#allocation2 + $0xc8] sm:$0xff]
    %v112 = vld [vmem:[#allocation2 + $0xd0] sm:$0xff]
    %v113 = vld [vmem:[#allocation2 + $0xd8] sm:$0xff]
    %v114 = vld [vmem:[#allocation2 + $0xe0] sm:$0xff]
    %v115 = vld [vmem:[#allocation2 + $0xe8] sm:$0xff]
    %v116 = vld [vmem:[#allocation2 + $0xf0] sm:$0xff]
    %v117 = vld [vmem:[#allocation2 + $0xf8] sm:$0xff]
    %v118 = vlaneseq
    %v119 = vshrl.u32 %v118, 7
    %v120 = vsub.s32 0, %v119
    %v121 = vrot.slane %v82, %v120
    %v122 = vlaneseq
    %v123 = vshrl.u32 %v122, 7
    %v124 = vsub.s32 0, %v123
    %v125 = vrot.slane %v83, %v124
    %v158 = vunpack.c.l.b16 %v86
    %v159 = vunpack.c.h.b16 %v86
    %v160 = vunpack.c.l.b16 %v87
    %v161 = vunpack.c.h.b16 %v87
    %v162 = vunpack.c.l.b16 %v88
    %v163 = vunpack.c.h.b16 %v88
    %v164 = vunpack.c.l.b16 %v89
    %v165 = vunpack.c.h.b16 %v89
    %v166 = vunpack.c.l.b16 %v90
    %v167 = vunpack.c.h.b16 %v90
    %v168 = vunpack.c.l.b16 %v91
    %v169 = vunpack.c.h.b16 %v91
    %v170 = vunpack.c.l.b16 %v92
    %v171 = vunpack.c.h.b16 %v92
    %v172 = vunpack.c.l.b16 %v93
    %v173 = vunpack.c.h.b16 %v93
    %v174 = vunpack.c.l.b16 %v94
    %v175 = vunpack.c.h.b16 %v94
    %v176 = vunpack.c.l.b16 %v95
    %v177 = vunpack.c.h.b16 %v95
    %v178 = vunpack.c.l.b16 %v96
    %v179 = vunpack.c.h.b16 %v96
    %v180 = vunpack.c.l.b16 %v97
    %v181 = vunpack.c.h.b16 %v97
    %v182 = vunpack.c.l.b16 %v98
    %v183 = vunpack.c.h.b16 %v98
    %v184 = vunpack.c.l.b16 %v99
    %v185 = vunpack.c.h.b16 %v99
    %v186 = vunpack.c.l.b16 %v100
    %v187 = vunpack.c.h.b16 %v100
    %v188 = vunpack.c.l.b16 %v101
    %v189 = vunpack.c.h.b16 %v101
    %v190 = vunpack.c.l.b16 %v102
    %v191 = vunpack.c.h.b16 %v102
    %v192 = vunpack.c.l.b16 %v103
    %v193 = vunpack.c.h.b16 %v103
    %v194 = vunpack.c.l.b16 %v104
    %v195 = vunpack.c.h.b16 %v104
    %v196 = vunpack.c.l.b16 %v105
    %v197 = vunpack.c.h.b16 %v105
    %v198 = vunpack.c.l.b16 %v106
    %v199 = vunpack.c.h.b16 %v106
    %v200 = vunpack.c.l.b16 %v107
    %v201 = vunpack.c.h.b16 %v107
    %v202 = vunpack.c.l.b16 %v108
    %v203 = vunpack.c.h.b16 %v108
    %v204 = vunpack.c.l.b16 %v109
    %v205 = vunpack.c.h.b16 %v109
    %v206 = vunpack.c.l.b16 %v110
    %v207 = vunpack.c.h.b16 %v110
    %v208 = vunpack.c.l.b16 %v111
    %v209 = vunpack.c.h.b16 %v111
    %v210 = vunpack.c.l.b16 %v112
    %v211 = vunpack.c.h.b16 %v112
    %v212 = vunpack.c.l.b16 %v113
    %v213 = vunpack.c.h.b16 %v113
    %v214 = vunpack.c.l.b16 %v114
    %v215 = vunpack.c.h.b16 %v114
    %v216 = vunpack.c.l.b16 %v115
    %v217 = vunpack.c.h.b16 %v115
    %v218 = vunpack.c.l.b16 %v116
    %v219 = vunpack.c.h.b16 %v116
    %v220 = vunpack.c.l.b16 %v117
    %v221 = vunpack.c.h.b16 %v117
    %v222 = vpack.c.b16 %v160, %v158
    %v223 = vpack.c.b16 %v161, %v159
    %v224 = vpack.c.b16 %v164, %v162
    %v225 = vpack.c.b16 %v165, %v163
    %v226 = vpack.c.b16 %v168, %v166
    %v227 = vpack.c.b16 %v169, %v167
    %v228 = vpack.c.b16 %v172, %v170
    %v229 = vpack.c.b16 %v173, %v171
    %v230 = vpack.c.b16 %v176, %v174
    %v231 = vpack.c.b16 %v177, %v175
    %v232 = vpack.c.b16 %v180, %v178
    %v233 = vpack.c.b16 %v181, %v179
    %v234 = vpack.c.b16 %v184, %v182
    %v235 = vpack.c.b16 %v185, %v183
    %v236 = vpack.c.b16 %v188, %v186
    %v237 = vpack.c.b16 %v189, %v187
    %v238 = vpack.c.b16 %v192, %v190
    %v239 = vpack.c.b16 %v193, %v191
    %v240 = vpack.c.b16 %v196, %v194
    %v241 = vpack.c.b16 %v197, %v195
    %v242 = vpack.c.b16 %v200, %v198
    %v243 = vpack.c.b16 %v201, %v199
    %v244 = vpack.c.b16 %v204, %v202
    %v245 = vpack.c.b16 %v205, %v203
    %v246 = vpack.c.b16 %v208, %v206
    %v247 = vpack.c.b16 %v209, %v207
    %v248 = vpack.c.b16 %v212, %v210
    %v249 = vpack.c.b16 %v213, %v211
    %v250 = vpack.c.b16 %v216, %v214
    %v251 = vpack.c.b16 %v217, %v215
    %v252 = vpack.c.b16 %v220, %v218
    %v253 = vpack.c.b16 %v221, %v219
    %286 = vmatprep.subr.bf16.mxu0 %v237
    %287 = vmatpush1.bf16.msra.mxu0 %v236
    %288 = vmatprep.subr.bf16.mxu0 %v235
    %289 = vmatpush1.bf16.msra.mxu0 %v234
    %290 = vmatprep.subr.bf16.mxu0 %v233
    %291 = vmatpush1.bf16.msra.mxu0 %v232
    %292 = vmatprep.subr.bf16.mxu0 %v231
    %293 = vmatpush1.bf16.msra.mxu0 %v230
    %294 = vmatprep.subr.bf16.mxu0 %v229
    %295 = vmatpush1.bf16.msra.mxu0 %v228
    %296 = vmatprep.subr.bf16.mxu0 %v227
    %297 = vmatpush1.bf16.msra.mxu0 %v226
    %298 = vmatprep.subr.bf16.mxu0 %v225
    %299 = vmatpush1.bf16.msra.mxu0 %v224
    %300 = vmatprep.subr.bf16.mxu0 %v223
    %301 = vmatpush1.bf16.msra.mxu0 %v222
    %302 = vmatprep.subr.bf16.mxu0 %v253
    %303 = vmatpush2.bf16.msra.mxu0 %v252
    %304 = vmatprep.subr.bf16.mxu0 %v251
    %305 = vmatpush2.bf16.msra.mxu0 %v250
    %306 = vmatprep.subr.bf16.mxu0 %v249
    %307 = vmatpush2.bf16.msra.mxu0 %v248
    %308 = vmatprep.subr.bf16.mxu0 %v247
    %309 = vmatpush2.bf16.msra.mxu0 %v246
    %310 = vmatprep.subr.bf16.mxu0 %v245
    %311 = vmatpush2.bf16.msra.mxu0 %v244
    %312 = vmatprep.subr.bf16.mxu0 %v243
    %313 = vmatpush2.bf16.msra.mxu0 %v242
    %314 = vmatprep.subr.bf16.mxu0 %v241
    %315 = vmatpush2.bf16.msra.mxu0 %v240
    %316 = vmatprep.subr.bf16.mxu0 %v239
    %317 = vmatpush2.bf16.msra.mxu0 %v238
    %318 = vmatprep.mubr.bf16.mxu0 %v85
    %319 = vmatmul.mubr.bf16.gmra.mxu0 %v84
    %v320 = vpop.f32.mrf.mxu0
    %v321 = vadd.f32 %v121, %v320
    %v322 = vpop.f32.mrf.mxu0
    %v323 = vadd.f32 %v125, %v322
    %v324 = vpop.f32.mrf.mxu0
    %v325 = vadd.f32 %v121, %v324
    %v326 = vpop.f32.mrf.mxu0
    %v327 = vadd.f32 %v125, %v326
    %328 = vdwg.mxu0
    %v329 = vadd.f32 %v321, %v323
    %330 = vadd.xlane.f32.xlu0 %v329
    %v331 = vpop.xlane.xlu0 %330
    %v332 = vadd.f32 %v325, %v327
    %333 = vadd.xlane.f32.xlu0 %v332
    %v334 = vpop.xlane.xlu0 %333
    %v335 = vrcp.pop 256.0
    %v336 = vmul.f32 %v331, %v335
    %v337 = vmul.f32 %v334, %v335
    %v338 = vmul.f32 %v321, %v321
    %v339 = vmul.f32 %v323, %v323
    %v340 = vmul.f32 %v325, %v325
    %v341 = vmul.f32 %v327, %v327
    %v342 = vadd.f32 %v338, %v339
    %343 = vadd.xlane.f32.xlu0 %v342
    %v344 = vpop.xlane.xlu0 %343
    %v345 = vadd.f32 %v340, %v341
    %346 = vadd.xlane.f32.xlu0 %v345
    %v347 = vpop.xlane.xlu0 %346
    %v348 = vmul.f32 %v344, %v335
    %v349 = vmul.f32 %v347, %v335
    %v350 = vmul.f32 %v336, %v336
    %v351 = vmul.f32 %v337, %v337
    %v352 = vsub.f32 %v348, %v350
    %v353 = vsub.f32 %v349, %v351
    %v354 = vmax.f32 %v352, 0.0
    %v355 = vmax.f32 %v353, 0.0
    %v356 = vsub.f32 %v321, %v336
    %v357 = vsub.f32 %v323, %v336
    %v358 = vsub.f32 %v325, %v337
    %v359 = vsub.f32 %v327, %v337
    %v360 = vadd.f32 %v354, 1e-05
    %v361 = vadd.f32 %v355, 1e-05
    %v362 = vrsqrt.pop %v360
    %v363 = vrsqrt.pop %v361
    %v364 = vmul.f32 %v356, %v362
    %v365 = vmul.f32 %v357, %v362
    %v366 = vmul.f32 %v358, %v363
    %v367 = vmul.f32 %v359, %v363
    %v368 = vlaneseq
    %v369 = vshrl.u32 %v368, 7
    %v370 = vsub.s32 1, %v369
    %v371 = vrot.slane %v82, %v370
    %v372 = vlaneseq
    %v373 = vshrl.u32 %v372, 7
    %v374 = vsub.s32 1, %v373
    %v375 = vrot.slane %v83, %v374
    %v376 = vmul.f32 %v364, %v371
    %v377 = vmul.f32 %v365, %v375
    %v378 = vmul.f32 %v366, %v371
    %v379 = vmul.f32 %v367, %v375
    %v380 = vlaneseq
    %v381 = vshrl.u32 %v380, 7
    %v382 = vsub.s32 2, %v381
    %v383 = vrot.slane %v82, %v382
    %v384 = vlaneseq
    %v385 = vshrl.u32 %v384, 7
    %v386 = vsub.s32 2, %v385
    %v387 = vrot.slane %v83, %v386
    %v388 = vadd.f32 %v376, %v383
    %v389 = vadd.f32 %v377, %v387
    %v390 = vadd.f32 %v378, %v383
    %v391 = vadd.f32 %v379, %v387
    %v392 = vmax.f32 %v388, 0.0
    %v393 = vmax.f32 %v389, 0.0
    %v394 = vmax.f32 %v390, 0.0
    %v395 = vmax.f32 %v391, 0.0
    %v396 = vpack.c.bf16 %v394, %v392
    %v397 = vpack.c.bf16 %v395, %v393
    %v398 = vld [vmem:[#allocation5] sm:$0xff]
    %v399 = vld [vmem:[#allocation5 + $0x8] sm:$0xff]
    %v400 = vld [vmem:[#allocation5 + $0x10] sm:$0xff]
    %v401 = vld [vmem:[#allocation5 + $0x18] sm:$0xff]
    %v402 = vld [vmem:[#allocation5 + $0x20] sm:$0xff]
    %v403 = vld [vmem:[#allocation5 + $0x28] sm:$0xff]
    %v404 = vld [vmem:[#allocation5 + $0x30] sm:$0xff]
    %v405 = vld [vmem:[#allocation5 + $0x38] sm:$0xff]
    %v406 = vld [vmem:[#allocation5 + $0x40] sm:$0xff]
    %v407 = vld [vmem:[#allocation5 + $0x48] sm:$0xff]
    %v408 = vld [vmem:[#allocation5 + $0x50] sm:$0xff]
    %v409 = vld [vmem:[#allocation5 + $0x58] sm:$0xff]
    %v410 = vld [vmem:[#allocation5 + $0x60] sm:$0xff]
    %v411 = vld [vmem:[#allocation5 + $0x68] sm:$0xff]
    %v412 = vld [vmem:[#allocation5 + $0x70] sm:$0xff]
    %v413 = vld [vmem:[#allocation5 + $0x78] sm:$0xff]
    %v414 = vld [vmem:[#allocation5 + $0x80] sm:$0xff]
    %v415 = vld [vmem:[#allocation5 + $0x88] sm:$0xff]
    %v416 = vld [vmem:[#allocation5 + $0x90] sm:$0xff]
    %v417 = vld [vmem:[#allocation5 + $0x98] sm:$0xff]
    %v418 = vld [vmem:[#allocation5 + $0xa0] sm:$0xff]
    %v419 = vld [vmem:[#allocation5 + $0xa8] sm:$0xff]
    %v420 = vld [vmem:[#allocation5 + $0xb0] sm:$0xff]
    %v421 = vld [vmem:[#allocation5 + $0xb8] sm:$0xff]
    %v422 = vld [vmem:[#allocation5 + $0xc0] sm:$0xff]
    %v423 = vld [vmem:[#allocation5 + $0xc8] sm:$0xff]
    %v424 = vld [vmem:[#allocation5 + $0xd0] sm:$0xff]
    %v425 = vld [vmem:[#allocation5 + $0xd8] sm:$0xff]
    %v426 = vld [vmem:[#allocation5 + $0xe0] sm:$0xff]
    %v427 = vld [vmem:[#allocation5 + $0xe8] sm:$0xff]
    %v428 = vld [vmem:[#allocation5 + $0xf0] sm:$0xff]
    %v429 = vld [vmem:[#allocation5 + $0xf8] sm:$0xff]
    %v430 = vlaneseq
    %v431 = vshrl.u32 %v430, 7
    %v432 = vsub.s32 3, %v431
    %v433 = vrot.slane %v82, %v432
    %v434 = vlaneseq
    %v435 = vshrl.u32 %v434, 7
    %v436 = vsub.s32 3, %v435
    %v437 = vrot.slane %v83, %v436
    %v470 = vunpack.c.l.b16 %v398
    %v471 = vunpack.c.h.b16 %v398
    %v472 = vunpack.c.l.b16 %v399
    %v473 = vunpack.c.h.b16 %v399
    %v474 = vunpack.c.l.b16 %v400
    %v475 = vunpack.c.h.b16 %v400
    %v476 = vunpack.c.l.b16 %v401
    %v477 = vunpack.c.h.b16 %v401
    %v478 = vunpack.c.l.b16 %v402
    %v479 = vunpack.c.h.b16 %v402
    %v480 = vunpack.c.l.b16 %v403
    %v481 = vunpack.c.h.b16 %v403
    %v482 = vunpack.c.l.b16 %v404
    %v483 = vunpack.c.h.b16 %v404
    %v484 = vunpack.c.l.b16 %v405
    %v485 = vunpack.c.h.b16 %v405
    %v486 = vunpack.c.l.b16 %v406
    %v487 = vunpack.c.h.b16 %v406
    %v488 = vunpack.c.l.b16 %v407
    %v489 = vunpack.c.h.b16 %v407
    %v490 = vunpack.c.l.b16 %v408
    %v491 = vunpack.c.h.b16 %v408
    %v492 = vunpack.c.l.b16 %v409
    %v493 = vunpack.c.h.b16 %v409
    %v494 = vunpack.c.l.b16 %v410
    %v495 = vunpack.c.h.b16 %v410
    %v496 = vunpack.c.l.b16 %v411
    %v497 = vunpack.c.h.b16 %v411
    %v498 = vunpack.c.l.b16 %v412
    %v499 = vunpack.c.h.b16 %v412
    %v500 = vunpack.c.l.b16 %v413
    %v501 = vunpack.c.h.b16 %v413
    %v502 = vunpack.c.l.b16 %v414
    %v503 = vunpack.c.h.b16 %v414
    %v504 = vunpack.c.l.b16 %v415
    %v505 = vunpack.c.h.b16 %v415
    %v506 = vunpack.c.l.b16 %v416
    %v507 = vunpack.c.h.b16 %v416
    %v508 = vunpack.c.l.b16 %v417
    %v509 = vunpack.c.h.b16 %v417
    %v510 = vunpack.c.l.b16 %v418
    %v511 = vunpack.c.h.b16 %v418
    %v512 = vunpack.c.l.b16 %v419
    %v513 = vunpack.c.h.b16 %v419
    %v514 = vunpack.c.l.b16 %v420
    %v515 = vunpack.c.h.b16 %v420
    %v516 = vunpack.c.l.b16 %v421
    %v517 = vunpack.c.h.b16 %v421
    %v518 = vunpack.c.l.b16 %v422
    %v519 = vunpack.c.h.b16 %v422
    %v520 = vunpack.c.l.b16 %v423
    %v521 = vunpack.c.h.b16 %v423
    %v522 = vunpack.c.l.b16 %v424
    %v523 = vunpack.c.h.b16 %v424
    %v524 = vunpack.c.l.b16 %v425
    %v525 = vunpack.c.h.b16 %v425
    %v526 = vunpack.c.l.b16 %v426
    %v527 = vunpack.c.h.b16 %v426
    %v528 = vunpack.c.l.b16 %v427
    %v529 = vunpack.c.h.b16 %v427
    %v530 = vunpack.c.l.b16 %v428
    %v531 = vunpack.c.h.b16 %v428
    %v532 = vunpack.c.l.b16 %v429
    %v533 = vunpack.c.h.b16 %v429
    %v534 = vpack.c.b16 %v472, %v470
    %v535 = vpack.c.b16 %v473, %v471
    %v536 = vpack.c.b16 %v476, %v474
    %v537 = vpack.c.b16 %v477, %v475
    %v538 = vpack.c.b16 %v480, %v478
    %v539 = vpack.c.b16 %v481, %v479
    %v540 = vpack.c.b16 %v484, %v482
    %v541 = vpack.c.b16 %v485, %v483
    %v542 = vpack.c.b16 %v488, %v486
    %v543 = vpack.c.b16 %v489, %v487
    %v544 = vpack.c.b16 %v492, %v490
    %v545 = vpack.c.b16 %v493, %v491
    %v546 = vpack.c.b16 %v496, %v494
    %v547 = vpack.c.b16 %v497, %v495
    %v548 = vpack.c.b16 %v500, %v498
    %v549 = vpack.c.b16 %v501, %v499
    %v550 = vpack.c.b16 %v504, %v502
    %v551 = vpack.c.b16 %v505, %v503
    %v552 = vpack.c.b16 %v508, %v506
    %v553 = vpack.c.b16 %v509, %v507
    %v554 = vpack.c.b16 %v512, %v510
    %v555 = vpack.c.b16 %v513, %v511
    %v556 = vpack.c.b16 %v516, %v514
    %v557 = vpack.c.b16 %v517, %v515
    %v558 = vpack.c.b16 %v520, %v518
    %v559 = vpack.c.b16 %v521, %v519
    %v560 = vpack.c.b16 %v524, %v522
    %v561 = vpack.c.b16 %v525, %v523
    %v562 = vpack.c.b16 %v528, %v526
    %v563 = vpack.c.b16 %v529, %v527
    %v564 = vpack.c.b16 %v532, %v530
    %v565 = vpack.c.b16 %v533, %v531
    %598 = vmatprep.subr.bf16.mxu0 %v549
    %599 = vmatpush1.bf16.msra.mxu0 %v548
    %600 = vmatprep.subr.bf16.mxu0 %v547
    %601 = vmatpush1.bf16.msra.mxu0 %v546
    %602 = vmatprep.subr.bf16.mxu0 %v545
    %603 = vmatpush1.bf16.msra.mxu0 %v544
    %604 = vmatprep.subr.bf16.mxu0 %v543
    %605 = vmatpush1.bf16.msra.mxu0 %v542
    %606 = vmatprep.subr.bf16.mxu0 %v541
    %607 = vmatpush1.bf16.msra.mxu0 %v540
    %608 = vmatprep.subr.bf16.mxu0 %v539
    %609 = vmatpush1.bf16.msra.mxu0 %v538
    %610 = vmatprep.subr.bf16.mxu0 %v537
    %611 = vmatpush1.bf16.msra.mxu0 %v536
    %612 = vmatprep.subr.bf16.mxu0 %v535
    %613 = vmatpush1.bf16.msra.mxu0 %v534
    %614 = vmatprep.subr.bf16.mxu0 %v565
    %615 = vmatpush2.bf16.msra.mxu0 %v564
    %616 = vmatprep.subr.bf16.mxu0 %v563
    %617 = vmatpush2.bf16.msra.mxu0 %v562
    %618 = vmatprep.subr.bf16.mxu0 %v561
    %619 = vmatpush2.bf16.msra.mxu0 %v560
    %620 = vmatprep.subr.bf16.mxu0 %v559
    %621 = vmatpush2.bf16.msra.mxu0 %v558
    %622 = vmatprep.subr.bf16.mxu0 %v557
    %623 = vmatpush2.bf16.msra.mxu0 %v556
    %624 = vmatprep.subr.bf16.mxu0 %v555
    %625 = vmatpush2.bf16.msra.mxu0 %v554
    %626 = vmatprep.subr.bf16.mxu0 %v553
    %627 = vmatpush2.bf16.msra.mxu0 %v552
    %628 = vmatprep.subr.bf16.mxu0 %v551
    %629 = vmatpush2.bf16.msra.mxu0 %v550
    %630 = vmatprep.mubr.bf16.mxu0 %v397
    %631 = vmatmul.mubr.bf16.gmra.mxu0 %v396
    %v632 = vpop.f32.mrf.mxu0
    %v633 = vadd.f32 %v433, %v632
    %v634 = vpop.f32.mrf.mxu0
    %v635 = vadd.f32 %v437, %v634
    %v636 = vpop.f32.mrf.mxu0
    %v637 = vadd.f32 %v433, %v636
    %v638 = vpop.f32.mrf.mxu0
    %v639 = vadd.f32 %v437, %v638
    %640 = vdwg.mxu0
    %v641 = vadd.f32 %v633, %v635
    %642 = vadd.xlane.f32.xlu0 %v641
    %v643 = vpop.xlane.xlu0 %642
    %v644 = vadd.f32 %v637, %v639
    %645 = vadd.xlane.f32.xlu0 %v644
    %v646 = vpop.xlane.xlu0 %645
    %v647 = vmul.f32 %v643, %v335
    %v648 = vmul.f32 %v646, %v335
    %v649 = vmul.f32 %v633, %v633
    %v650 = vmul.f32 %v635, %v635
    %v651 = vmul.f32 %v637, %v637
    %v652 = vmul.f32 %v639, %v639
    %v653 = vadd.f32 %v649, %v650
    %654 = vadd.xlane.f32.xlu0 %v653
    %v655 = vpop.xlane.xlu0 %654
    %v656 = vadd.f32 %v651, %v652
    %657 = vadd.xlane.f32.xlu0 %v656
    %v658 = vpop.xlane.xlu0 %657
    %v659 = vmul.f32 %v655, %v335
    %v660 = vmul.f32 %v658, %v335
    %v661 = vmul.f32 %v647, %v647
    %v662 = vmul.f32 %v648, %v648
    %v663 = vsub.f32 %v659, %v661
    %v664 = vsub.f32 %v660, %v662
    %v665 = vmax.f32 %v663, 0.0
    %v666 = vmax.f32 %v664, 0.0
    %v667 = vsub.f32 %v633, %v647
    %v668 = vsub.f32 %v635, %v647
    %v669 = vsub.f32 %v637, %v648
    %v670 = vsub.f32 %v639, %v648
    %v671 = vadd.f32 %v665, 1e-05
    %v672 = vadd.f32 %v666, 1e-05
    %v673 = vrsqrt.pop %v671
    %v674 = vrsqrt.pop %v672
    %v675 = vmul.f32 %v667, %v673
    %v676 = vmul.f32 %v668, %v673
    %v677 = vmul.f32 %v669, %v674
    %v678 = vmul.f32 %v670, %v674
    %v679 = vlaneseq
    %v680 = vshrl.u32 %v679, 7
    %v681 = vsub.s32 4, %v680
    %v682 = vrot.slane %v82, %v681
    %v683 = vlaneseq
    %v684 = vshrl.u32 %v683, 7
    %v685 = vsub.s32 4, %v684
    %v686 = vrot.slane %v83, %v685
    %v687 = vmul.f32 %v675, %v682
    %v688 = vmul.f32 %v676, %v686
    %v689 = vmul.f32 %v677, %v682
    %v690 = vmul.f32 %v678, %v686
    %v691 = vlaneseq
    %v692 = vshrl.u32 %v691, 7
    %v693 = vsub.s32 5, %v692
    %v694 = vrot.slane %v82, %v693
    %v695 = vlaneseq
    %v696 = vshrl.u32 %v695, 7
    %v697 = vsub.s32 5, %v696
    %v698 = vrot.slane %v83, %v697
    %v699 = vadd.f32 %v687, %v694
    %v700 = vadd.f32 %v688, %v698
    %v701 = vadd.f32 %v689, %v694
    %v702 = vadd.f32 %v690, %v698
    %v703 = vmax.f32 %v699, 0.0
    %v704 = vmax.f32 %v700, 0.0
    %v705 = vmax.f32 %v701, 0.0
    %v706 = vmax.f32 %v702, 0.0
    %v707 = vpack.c.bf16 %v705, %v703
    %v708 = vpack.c.bf16 %v706, %v704
    %v709 = vld [vmem:[#allocation7] sm:$0xf]
    %v710 = vld [vmem:[#allocation7 + $0x4] sm:$0xf]
    %v711 = vld [vmem:[#allocation7 + $0x8] sm:$0xf]
    %v712 = vld [vmem:[#allocation7 + $0xc] sm:$0xf]
    %v713 = vld [vmem:[#allocation7 + $0x10] sm:$0xf]
    %v714 = vld [vmem:[#allocation7 + $0x14] sm:$0xf]
    %v715 = vld [vmem:[#allocation7 + $0x18] sm:$0xf]
    %v716 = vld [vmem:[#allocation7 + $0x1c] sm:$0xf]
    %v717 = vld [vmem:[#allocation7 + $0x20] sm:$0xf]
    %v718 = vld [vmem:[#allocation7 + $0x24] sm:$0xf]
    %v719 = vld [vmem:[#allocation7 + $0x28] sm:$0xf]
    %v720 = vld [vmem:[#allocation7 + $0x2c] sm:$0xf]
    %v721 = vld [vmem:[#allocation7 + $0x30] sm:$0xf]
    %v722 = vld [vmem:[#allocation7 + $0x34] sm:$0xf]
    %v723 = vld [vmem:[#allocation7 + $0x38] sm:$0xf]
    %v724 = vld [vmem:[#allocation7 + $0x3c] sm:$0xf]
    %v725 = vld [vmem:[#allocation7 + $0x40] sm:$0xf]
    %v726 = vld [vmem:[#allocation7 + $0x44] sm:$0xf]
    %v727 = vld [vmem:[#allocation7 + $0x48] sm:$0xf]
    %v728 = vld [vmem:[#allocation7 + $0x4c] sm:$0xf]
    %v729 = vld [vmem:[#allocation7 + $0x50] sm:$0xf]
    %v730 = vld [vmem:[#allocation7 + $0x54] sm:$0xf]
    %v731 = vld [vmem:[#allocation7 + $0x58] sm:$0xf]
    %v732 = vld [vmem:[#allocation7 + $0x5c] sm:$0xf]
    %v733 = vld [vmem:[#allocation7 + $0x60] sm:$0xf]
    %v734 = vld [vmem:[#allocation7 + $0x64] sm:$0xf]
    %v735 = vld [vmem:[#allocation7 + $0x68] sm:$0xf]
    %v736 = vld [vmem:[#allocation7 + $0x6c] sm:$0xf]
    %v737 = vld [vmem:[#allocation7 + $0x70] sm:$0xf]
    %v738 = vld [vmem:[#allocation7 + $0x74] sm:$0xf]
    %v739 = vld [vmem:[#allocation7 + $0x78] sm:$0xf]
    %v740 = vld [vmem:[#allocation7 + $0x7c] sm:$0xf]
    %v741 = vld [vmem:[#allocation8] sm:$0x1]
    %v743 = vlaneseq
    %v744 = vshrl.u32 %v743, 7
    %v745 = vsub.s32 0, %v744
    %v746 = vrot.slane %v741, %v745
    %v780 = vunpack.c.l.b16 %v709
    %v781 = vunpack.c.l.b16 %v710
    %v782 = vunpack.c.l.b16 %v711
    %v783 = vunpack.c.l.b16 %v712
    %v784 = vunpack.c.l.b16 %v713
    %v785 = vunpack.c.l.b16 %v714
    %v786 = vunpack.c.l.b16 %v715
    %v787 = vunpack.c.l.b16 %v716
    %v788 = vunpack.c.l.b16 %v717
    %v789 = vunpack.c.l.b16 %v718
    %v790 = vunpack.c.l.b16 %v719
    %v791 = vunpack.c.l.b16 %v720
    %v792 = vunpack.c.l.b16 %v721
    %v793 = vunpack.c.l.b16 %v722
    %v794 = vunpack.c.l.b16 %v723
    %v795 = vunpack.c.l.b16 %v724
    %v796 = vunpack.c.l.b16 %v725
    %v797 = vunpack.c.l.b16 %v726
    %v798 = vunpack.c.l.b16 %v727
    %v799 = vunpack.c.l.b16 %v728
    %v800 = vunpack.c.l.b16 %v729
    %v801 = vunpack.c.l.b16 %v730
    %v802 = vunpack.c.l.b16 %v731
    %v803 = vunpack.c.l.b16 %v732
    %v804 = vunpack.c.l.b16 %v733
    %v805 = vunpack.c.l.b16 %v734
    %v806 = vunpack.c.l.b16 %v735
    %v807 = vunpack.c.l.b16 %v736
    %v808 = vunpack.c.l.b16 %v737
    %v809 = vunpack.c.l.b16 %v738
    %v810 = vunpack.c.l.b16 %v739
    %v811 = vunpack.c.l.b16 %v740
    %v812 = vpack.c.b16 %v781, %v780
    %v813 = vpack.c.b16 %v783, %v782
    %v814 = vpack.c.b16 %v785, %v784
    %v815 = vpack.c.b16 %v787, %v786
    %v816 = vpack.c.b16 %v789, %v788
    %v817 = vpack.c.b16 %v791, %v790
    %v818 = vpack.c.b16 %v793, %v792
    %v819 = vpack.c.b16 %v795, %v794
    %v820 = vpack.c.b16 %v797, %v796
    %v821 = vpack.c.b16 %v799, %v798
    %v822 = vpack.c.b16 %v801, %v800
    %v823 = vpack.c.b16 %v803, %v802
    %v824 = vpack.c.b16 %v805, %v804
    %v825 = vpack.c.b16 %v807, %v806
    %v826 = vpack.c.b16 %v809, %v808
    %v827 = vpack.c.b16 %v811, %v810
    %844 = vmatprep.subr.bf16.mxu0 0
    %845 = vmatpush1.bf16.msra.mxu0 %v819
    %846 = vmatprep.subr.bf16.mxu0 0
    %847 = vmatpush1.bf16.msra.mxu0 %v818
    %848 = vmatprep.subr.bf16.mxu0 0
    %849 = vmatpush1.bf16.msra.mxu0 %v817
    %850 = vmatprep.subr.bf16.mxu0 0
    %851 = vmatpush1.bf16.msra.mxu0 %v816
    %852 = vmatprep.subr.bf16.mxu0 0
    %853 = vmatpush1.bf16.msra.mxu0 %v815
    %854 = vmatprep.subr.bf16.mxu0 0
    %855 = vmatpush1.bf16.msra.mxu0 %v814
    %856 = vmatprep.subr.bf16.mxu0 0
    %857 = vmatpush1.bf16.msra.mxu0 %v813
    %858 = vmatprep.subr.bf16.mxu0 0
    %859 = vmatpush1.bf16.msra.mxu0 %v812
    %860 = vmatprep.subr.bf16.mxu0 0
    %861 = vmatpush2.bf16.msra.mxu0 %v827
    %862 = vmatprep.subr.bf16.mxu0 0
    %863 = vmatpush2.bf16.msra.mxu0 %v826
    %864 = vmatprep.subr.bf16.mxu0 0
    %865 = vmatpush2.bf16.msra.mxu0 %v825
    %866 = vmatprep.subr.bf16.mxu0 0
    %867 = vmatpush2.bf16.msra.mxu0 %v824
    %868 = vmatprep.subr.bf16.mxu0 0
    %869 = vmatpush2.bf16.msra.mxu0 %v823
    %870 = vmatprep.subr.bf16.mxu0 0
    %871 = vmatpush2.bf16.msra.mxu0 %v822
    %872 = vmatprep.subr.bf16.mxu0 0
    %873 = vmatpush2.bf16.msra.mxu0 %v821
    %874 = vmatprep.subr.bf16.mxu0 0
    %875 = vmatpush2.bf16.msra.mxu0 %v820
    %876 = vmatprep.mubr.bf16.mxu0 %v708
    %877 = vmatmul.mubr.bf16.gmra.mxu0 %v707
    %v878 = vpop.f32.mrf.mxu0
    %v879 = vadd.f32 %v746, %v878
    %v880 = vpop.f32.mrf.mxu0
    %v881 = vpop.f32.mrf.mxu0
    %v882 = vadd.f32 %v746, %v881
    %v883 = vpop.f32.mrf.mxu0
    %884 = vdwg.mxu0
    %885 = vst [vmem:[#allocation10] sm:$0xff] %v879
    %886 = vst [vmem:[#allocation10 + $0x8] sm:$0xff] %v882
    // Predicated region
    $region42: #{layernormnet_forward.1} parent=1 // pred_check
      _
    $region43: #{layernormnet_forward.1} parent=1 // pred_check_branch
      %888 = sbr.rel (0) target = $region45
    $region44: #{layernormnet_forward.1} parent=1 // pred_region
      %s890 = ssub.s32 256, 256
      %891 = vsyncadd [#allocation4], %s890
      %s892 = sshll.u32 [#allocation10], 4
      %s893 = int_to_ptr.vmem [resolvable:$true] %s892
      %898 = dma.vmem_to_hbm [thread:$0]  %s893, 256, %s6, [#allocation4], 128, 128, 8
    $region45: #{layernormnet_forward.1} parent=1 // pred_fallthru
      _
    // Predicated region
    $region46: #{layernormnet_forward.1} parent=1 // pred_check
      _
    $region47: #{layernormnet_forward.1} parent=1 // pred_check_branch
      %900 = sbr.rel (0) target = $region49
    $region48: #{layernormnet_forward.1} parent=1 // pred_region
      %901 = dma.done [#allocation4], 256
    $region49: #{layernormnet_forward.1} parent=1 // pred_fallthru
      _
    %902 = vsyncpa [#allocation3], 1
    %903 = vsyncpa [#allocation6], 1
    %904 = vsyncpa [#allocation9], 1
    %905 = vsyncpa [#allocation4], 1

</llo_original>
